<compile_context>
chip_gen: v7x
topology: tpu7x:2x2x1
jax: 0.10.0
libtpu: 0.0.40
codegen_flags: <defaults>
</compile_context>

<pallas_src>
import numpy as np
import jax
import jax.numpy as jnp
from jax.experimental import pallas as pl
from jax.experimental.pallas import tpu as pltpu

DEGREE = 3                       # degree used by the demo / test at the bottom
_TARGET_BLOCK_ELEMS = 512 * 1024 # ~2 MiB per f32 buffer per pipeline stage


# ----------------------------------------------------------------------------- #
# Scalar glue: monomial coefficients of P_degree^{alpha,beta}(t)                 #
# ----------------------------------------------------------------------------- #
def _jacobi_coeffs(degree, a, b):
    """Monomial coefficients [c0, ..., c_degree] of the classical Jacobi
    polynomial P_degree^{a,b}(t), built from the 3-term recurrence on traced
    scalars (runs in the wrapper, negligible cost)."""
    p_nm2 = [jnp.float32(1.0)]
    if degree == 0:
        return p_nm2
    p_nm1 = [(a - b) * 0.5, (a + b + 2.0) * 0.5]
    if degree == 1:
        return p_nm1
    for k in range(2, degree + 1):
        n = float(k)
        c = 2.0 * n + a + b
        denom = 2.0 * n * (n + a + b) * (c - 2.0)
        A = (c - 1.0) * c * (c - 2.0) / denom
        B = (c - 1.0) * (a * a - b * b) / denom
        C = 2.0 * (n + a - 1.0) * (n + b - 1.0) * c / denom
        p_n = [jnp.float32(0.0)] * (k + 1)
        for i, coef in enumerate(p_nm1):
            p_n[i] = p_n[i] + B * coef
            p_n[i + 1] = p_n[i + 1] + A * coef
        for i, coef in enumerate(p_nm2):
            p_n[i] = p_n[i] - C * coef
        p_nm2, p_nm1 = p_nm1, p_n
    return p_nm1


def _jacobi_recurrence(t, degree, alpha, beta):
    """Tensor-form 3-term recurrence (used only by the pure-JAX reference)."""
    if degree == 0:
        return jnp.ones_like(t)
    p_nm2 = jnp.ones_like(t)
    p_nm1 = 0.5 * (alpha - beta + (alpha + beta + 2.0) * t)
    if degree == 1:
        return p_nm1
    p_n = p_nm1
    for k in range(2, degree + 1):
        n = jnp.float32(k)
        c = 2.0 * n + alpha + beta
        denom = 2.0 * n * (n + alpha + beta) * (c - 2.0)
        A = (c - 1.0) * c * (c - 2.0) / denom
        B = (c - 1.0) * (alpha * alpha - beta * beta) / denom
        C = 2.0 * (n + alpha - 1.0) * (n + beta - 1.0) * c / denom
        p_n = (A * t + B) * p_nm1 - C * p_nm2
        p_nm2, p_nm1 = p_nm1, p_n
    return p_n


# ----------------------------------------------------------------------------- #
# Pallas kernel (degree baked in at trace time -> fully unrolled Horner)         #
# ----------------------------------------------------------------------------- #
def _make_fjnb_kernel(degree):
    def kernel(params_ref, x_ref, o_ref):
        # params_ref (SMEM, f32[degree+2]): [gamma, c0, c1, ..., c_degree]
        gamma = params_ref[0]

        xf = x_ref[...].astype(jnp.float32)      # compute in f32 (v5e-safe)

        # t = 2 * sigmoid(x)**gamma - 1  ==  2 * exp(-gamma * softplus(-x)) - 1
        # softplus(-x) = max(-x, 0) + log(1 + exp(-|x|))   (numerically stable)
        sp = jnp.maximum(-xf, 0.0) + jnp.log(1.0 + jnp.exp(-jnp.abs(xf)))
        t = 2.0 * jnp.exp(-gamma * sp) - 1.0

        # Horner evaluation of P_degree^{alpha,beta}(t) with precomputed coeffs.
        if degree == 0:
            acc = jnp.full_like(t, params_ref[1])
        else:
            acc = params_ref[1 + degree] * t + params_ref[degree]
            for k in range(degree - 2, -1, -1):
                acc = acc * t + params_ref[1 + k]

        o_ref[...] = acc.astype(o_ref.dtype)     # store at native width

    return kernel


# ----------------------------------------------------------------------------- #
# Wrapper                                                                        #
# ----------------------------------------------------------------------------- #
def fractional_jacobi_block(x, alpha, beta, gamma, degree=DEGREE):
    """Pallas-backed forward pass of FractionalJacobiNeuralBlock.

    x: any-shaped array (e.g. NCHW conv activations), any float dtype.
    alpha, beta, gamma: shape-(1,) trainable scalar parameters (raw).
    degree: static Python int (degree of the Jacobi polynomial).
    """
    degree = int(degree)
    orig_shape = x.shape
    dtype = x.dtype
    n = int(np.prod(orig_shape)) if len(orig_shape) else 1

    # --- parameter normalization + Jacobi monomial coefficients (scalar glue) ---
    a = jax.nn.elu(alpha.astype(jnp.float32).reshape(()))       # F.elu(alpha, 1)
    b = jax.nn.elu(beta.astype(jnp.float32).reshape(()))        # F.elu(beta, 1)
    g = jax.nn.sigmoid(gamma.astype(jnp.float32).reshape(()))   # sigmoid(gamma)
    coeffs = _jacobi_coeffs(degree, a, b)                       # [c0 .. c_degree]
    params = jnp.stack([g] + [jnp.asarray(c, jnp.float32) for c in coeffs])
    params = params.astype(jnp.float32)                         # f32[degree + 2]

    # --- lane-dense 2D slab in the NATIVE dtype (no f32 up-cast, no pad copy) ---
    lane = None
    for cand in (1024, 512, 256, 128):
        if n % cand == 0:
            lane = cand
            break
    flat = x.reshape(-1)
    if lane is None:
        # rare fallback: minimal pad to a multiple of 128 lanes
        lane = 128
        pad = (-n) % lane
        flat = jnp.concatenate([flat, jnp.zeros((pad,), dtype)])
    rows = flat.shape[0] // lane
    x2d = flat.reshape(rows, lane)

    # ~2 MiB (f32-equivalent) block; full-array block for small inputs.
    block_rows = min(rows, max(8, _TARGET_BLOCK_ELEMS // lane))
    if block_rows < rows:
        # tiled path: round to 32 sublanes (safe for f32/bf16/int8 packing)
        block_rows = max(32, (block_rows // 32) * 32)
        block_rows = min(block_rows, rows)
    grid = (pl.cdiv(rows, block_rows),)

    out2d = pl.pallas_call(
        _make_fjnb_kernel(degree),
        out_shape=jax.ShapeDtypeStruct((rows, lane), dtype),
        grid_spec=pl.GridSpec(
            grid=grid,
            in_specs=[
                pl.BlockSpec(memory_space=pltpu.SMEM),               # scalar params
                pl.BlockSpec((block_rows, lane), lambda i: (i, 0)),  # input tile
            ],
            out_specs=pl.BlockSpec((block_rows, lane), lambda i: (i, 0)),
        ),
        compiler_params=pltpu.CompilerParams(
            dimension_semantics=("parallel",),
            vmem_limit_bytes=32 * 1024 * 1024,
        ),
    )(params, x2d)

    out = out2d.reshape(-1)
    if out.shape[0] != n:
        out = out[:n]
    return out.reshape(orig_shape)


# ----------------------------------------------------------------------------- #
# Pure-JAX reference mirroring the PyTorch forward                              #
# ----------------------------------------------------------------------------- #
def _reference(x, alpha, beta, gamma, degree=DEGREE):
    na = jax.nn.elu(alpha.astype(jnp.float32))[0]
    nb = jax.nn.elu(beta.astype(jnp.float32))[0]
    ng = jax.nn.sigmoid(gamma.astype(jnp.float32))[0]
    s = jax.nn.sigmoid(x.astype(jnp.float32))
    t = 2.0 * jnp.power(s, ng) - 1.0
    return _jacobi_recurrence(t, degree, na, nb).astype(x.dtype)


if __name__ == "__main__":
    key = jax.random.PRNGKey(0)
    # NCHW activations, as would be produced by a conv layer.
    x = jax.random.normal(key, (2, 4, 16, 16), dtype=jnp.float32)

    # Deterministic parameter init, exactly as in the module's __init__:
    alpha = jnp.ones((1,), jnp.float32)
    beta = jnp.ones((1,), jnp.float32)
    gamma = jnp.zeros((1,), jnp.float32)

    fn = jax.jit(fractional_jacobi_block, static_argnames=("degree",))
    out = jax.block_until_ready(fn(x, alpha, beta, gamma, degree=DEGREE))

    ref = jax.block_until_ready(_reference(x, alpha, beta, gamma, degree=DEGREE))
    assert out.shape == x.shape and out.dtype == x.dtype
    np.testing.assert_allclose(np.asarray(out), np.asarray(ref),
                               rtol=1e-4, atol=1e-5)

    print("KERNEL_OK")
</pallas_src>

<mosaic_0001>
module attributes {stable_mosaic.version = 11 : i64} {
  func.func @kernel(%arg0: i32, %arg1: memref<5xf32, #tpu.memory_space<smem>>, %arg2: memref<2x1024xf32, #tpu.memory_space<vmem>>, %arg3: memref<2x1024xf32, #tpu.memory_space<vmem>>) attributes {dimension_semantics = [#tpu.dimension_semantics<parallel>], iteration_bounds = array<i64: 1>, scalar_prefetch = 0 : i64, scratch_operands = 0 : i64, tpu.core_type = #tpu.core_type<tc>, window_params = [{transform_indices = @transform_0, window_bounds = array<i64: 5>}, {transform_indices = @transform_1, window_bounds = array<i64: 2, 1024>}, {transform_indices = @transform_2, window_bounds = array<i64: 2, 1024>}]} {
    %c0 = arith.constant 0 : index
    %0 = memref.load %arg1[%c0] : memref<5xf32, #tpu.memory_space<smem>>
    %c0_0 = arith.constant 0 : index
    %c0_1 = arith.constant 0 : index
    %1 = vector.load %arg2[%c0_0, %c0_1] : memref<2x1024xf32, #tpu.memory_space<vmem>>, vector<2x1024xf32>
    %cst = arith.constant 0.000000e+00 : f32
    %2 = vector.broadcast %cst : f32 to vector<2x1024xf32>
    %3 = arith.subf %2, %1 : vector<2x1024xf32>
    %cst_2 = arith.constant 0.000000e+00 : f32
    %4 = vector.broadcast %cst_2 : f32 to vector<2x1024xf32>
    %5 = arith.maximumf %3, %4 : vector<2x1024xf32>
    %6 = math.absf %1 : vector<2x1024xf32>
    %cst_3 = arith.constant 0.000000e+00 : f32
    %7 = vector.broadcast %cst_3 : f32 to vector<2x1024xf32>
    %8 = arith.subf %7, %6 : vector<2x1024xf32>
    %9 = math.exp %8 : vector<2x1024xf32>
    %cst_4 = arith.constant 1.000000e+00 : f32
    %10 = vector.broadcast %cst_4 : f32 to vector<2x1024xf32>
    %11 = arith.addf %10, %9 : vector<2x1024xf32>
    %12 = math.log %11 : vector<2x1024xf32>
    %13 = arith.addf %5, %12 : vector<2x1024xf32>
    %cst_5 = arith.constant 0.000000e+00 : f32
    %14 = arith.subf %cst_5, %0 : f32
    %15 = vector.broadcast %14 : f32 to vector<2x1024xf32>
    %16 = arith.mulf %15, %13 : vector<2x1024xf32>
    %17 = math.exp %16 : vector<2x1024xf32>
    %cst_6 = arith.constant 2.000000e+00 : f32
    %18 = vector.broadcast %cst_6 : f32 to vector<2x1024xf32>
    %19 = arith.mulf %18, %17 : vector<2x1024xf32>
    %cst_7 = arith.constant 1.000000e+00 : f32
    %20 = vector.broadcast %cst_7 : f32 to vector<2x1024xf32>
    %21 = arith.subf %19, %20 : vector<2x1024xf32>
    %c4 = arith.constant 4 : index
    %22 = memref.load %arg1[%c4] : memref<5xf32, #tpu.memory_space<smem>>
    %23 = vector.broadcast %22 : f32 to vector<2x1024xf32>
    %24 = arith.mulf %23, %21 : vector<2x1024xf32>
    %c3 = arith.constant 3 : index
    %25 = memref.load %arg1[%c3] : memref<5xf32, #tpu.memory_space<smem>>
    %26 = vector.broadcast %25 : f32 to vector<2x1024xf32>
    %27 = arith.addf %24, %26 : vector<2x1024xf32>
    %28 = arith.mulf %27, %21 : vector<2x1024xf32>
    %c2 = arith.constant 2 : index
    %29 = memref.load %arg1[%c2] : memref<5xf32, #tpu.memory_space<smem>>
    %30 = vector.broadcast %29 : f32 to vector<2x1024xf32>
    %31 = arith.addf %28, %30 : vector<2x1024xf32>
    %32 = arith.mulf %31, %21 : vector<2x1024xf32>
    %c1 = arith.constant 1 : index
    %33 = memref.load %arg1[%c1] : memref<5xf32, #tpu.memory_space<smem>>
    %34 = vector.broadcast %33 : f32 to vector<2x1024xf32>
    %35 = arith.addf %32, %34 : vector<2x1024xf32>
    %c0_8 = arith.constant 0 : index
    %c0_9 = arith.constant 0 : index
    %36 = vector.load %arg3[%c0_8, %c0_9] : memref<2x1024xf32, #tpu.memory_space<vmem>>, vector<2x1024xf32>
    tpu.vector_store %arg3[%c0_8, %c0_9], %35 {strides = array<i32>} : memref<2x1024xf32, #tpu.memory_space<vmem>>, vector<2x1024xf32>,
    return
  }
  func.func @transform_0(%arg0: i32) -> i32 {
    %c0_i32 = arith.constant 0 : i32
    %c0_i32_0 = arith.constant 0 : i32
    return %c0_i32 : i32
  }
  func.func @transform_1(%arg0: i32) -> (i32, i32) {
    %c0_i32 = arith.constant 0 : i32
    %c0_i32_0 = arith.constant 0 : i32
    return %arg0, %c0_i32 : i32, i32
  }
  func.func @transform_2(%arg0: i32) -> (i32, i32) {
    %c0_i32 = arith.constant 0 : i32
    %c0_i32_0 = arith.constant 0 : i32
    return %arg0, %c0_i32 : i32, i32
  }
}

</mosaic_0001>

<llo_original>
// kernel: fractional_jacobi_block.1
$region0: #{fractional_jacobi_block.1}
  #allocation0 [shape = 'u32[]', space=smem, size = 0x4, offset = 0x4, fixed_abs, tag = 'smem constant byte address 0x4 - core index']
  #allocation1 [shape = 'u32[144,128]{1,0:T(1,128)}', space=vmem, size = 0x12000, scoped, tag = 'internal scratch']
  %s0 = inlined_call_operand.vmem [shape: f32[5], index: 0, kind: input, shape index: {}]
  %s1 = inlined_call_operand.vmem [shape: f32[2,1024], index: 1, kind: input, shape index: {}]
  %s2 = inlined_call_operand.vmem [shape: f32[2,1024], index: 2, kind: output, shape index: {}]
  %s3 = sld [smem:[#allocation0]]
  $region22: #{fractional_jacobi_block.1} parent=0
    _
  %s5 = ssub.s32 1, %s3
  %s6 = scalar_select 0, %s5, %s3
  $region1: #{fractional_jacobi_block.1} parent=0
    #allocation2 [shape = 'u8[512]{0}', space=smem, size = 0x200, scoped, tag = 'input window, operand 0, single buffered']
    #allocation3 [shape = 's32[1]{0}', space=sflag, size = 0x4, scoped, tag = 'scoped memory for fractional_jacobi_block.1']
    %7 = vsyncpa [#allocation3], 0
    // Predicated region
    $region2: #{fractional_jacobi_block.1} parent=1 // pred_check
      _
    $region3: #{fractional_jacobi_block.1} parent=1 // pred_check_branch
      %9 = sbr.rel (0) target = $region5
    $region4: #{fractional_jacobi_block.1} parent=1 // pred_region
      %s11 = ssub.s32 16, 16
      %12 = vsyncadd [#allocation3], %s11
      %s14 = sshll.u32 %s0, 4
      %s15 = int_to_ptr.vmem [resolvable:$true] %s14
      %17 = dma.vmem_to_smem %s15, 16, [#allocation2], [#allocation3]
    $region5: #{fractional_jacobi_block.1} parent=1 // pred_fallthru
      _
    // Predicated region
    $region6: #{fractional_jacobi_block.1} parent=1 // pred_check
      _
    $region7: #{fractional_jacobi_block.1} parent=1 // pred_check_branch
      %19 = sbr.rel (0) target = $region9
    $region8: #{fractional_jacobi_block.1} parent=1 // pred_region
      _
    $region9: #{fractional_jacobi_block.1} parent=1 // pred_fallthru
      _
    // Predicated region
    $region10: #{fractional_jacobi_block.1} parent=1 // pred_check
      _
    $region11: #{fractional_jacobi_block.1} parent=1 // pred_check_branch
      %21 = sbr.rel (0) target = $region13
    $region12: #{fractional_jacobi_block.1} parent=1 // pred_region
      %22 = dma.done [#allocation3], 16
    $region13: #{fractional_jacobi_block.1} parent=1 // pred_fallthru
      _
    %23 = sfence
    %s24 = sld [smem:[#allocation2]]
    %v25 = vld [vmem:[%s1] sm:$0xff]
    %v26 = vld [vmem:[%s1 + $0x8] sm:$0xff]
    %v27 = vsub.f32 0.0, %v25
    %v28 = vsub.f32 0.0, %v26
    %v29 = vmax.f32 %v27, 0.0
    %v30 = vmax.f32 %v28, 0.0
    %v31 = vand.u32 2147483647, %v25
    %v32 = vand.u32 2147483647, %v26
    %v33 = vsub.f32 0.0, %v31
    %v34 = vsub.f32 0.0, %v32
    %v35 = vmul.f32 %v33, 1.442695
    %v36 = vpow.pop %v35
    %v37 = vmul.f32 %v34, 1.442695
    %v38 = vpow.pop %v37
    %v39 = vadd.f32 %v36, 1.0
    %v40 = vadd.f32 %v38, 1.0
    %v41 = vlog2.pop %v39
    %v42 = vmul.f32 %v41, 0.6931472
    %v43 = vlog2.pop %v40
    %v44 = vmul.f32 %v43, 0.6931472
    %v45 = vadd.f32 %v29, %v42
    %v46 = vadd.f32 %v30, %v44
    %s47 = ssub.f32 0.0, %s24
    %v48 = vstv %s47
    %v49 = vmul.f32 %v48, %v45
    %v50 = vmul.f32 %v48, %v46
    %v51 = vmul.f32 %v49, 1.442695
    %v52 = vpow.pop %v51
    %v53 = vmul.f32 %v50, 1.442695
    %v54 = vpow.pop %v53
    %v55 = vmul.f32 %v52, 2.0
    %v56 = vmul.f32 %v54, 2.0
    %v57 = vsub.f32 %v55, 1.0
    %v58 = vsub.f32 %v56, 1.0
    %s59 = sld [smem:[#allocation2 + $0x4]]
    %v60 = vstv %s59
    %v61 = vmul.f32 %v60, %v57
    %v62 = vmul.f32 %v60, %v58
    %s63 = sld [smem:[#allocation2 + $0x3]]
    %v64 = vstv %s63
    %v65 = vadd.f32 %v61, %v64
    %v66 = vadd.f32 %v62, %v64
    %v67 = vmul.f32 %v65, %v57
    %v68 = vmul.f32 %v66, %v58
    %s69 = sld [smem:[#allocation2 + $0x2]]
    %v70 = vstv %s69
    %v71 = vadd.f32 %v67, %v70
    %v72 = vadd.f32 %v68, %v70
    %v73 = vmul.f32 %v71, %v57
    %v74 = vmul.f32 %v72, %v58
    %s75 = sld [smem:[#allocation2 + $0x1]]
    %v76 = vstv %s75
    %v77 = vadd.f32 %v73, %v76
    %v78 = vadd.f32 %v74, %v76
    %79 = vst [vmem:[%s2] sm:$0xff] %v77
    %80 = vst [vmem:[%s2 + $0x8] sm:$0xff] %v78
    // Predicated region
    $region14: #{fractional_jacobi_block.1} parent=1 // pred_check
      _
    $region15: #{fractional_jacobi_block.1} parent=1 // pred_check_branch
      %82 = sbr.rel (0) target = $region17
    $region16: #{fractional_jacobi_block.1} parent=1 // pred_region
      _
    $region17: #{fractional_jacobi_block.1} parent=1 // pred_fallthru
      _
    // Predicated region
    $region18: #{fractional_jacobi_block.1} parent=1 // pred_check
      _
    $region19: #{fractional_jacobi_block.1} parent=1 // pred_check_branch
      %84 = sbr.rel (0) target = $region21
    $region20: #{fractional_jacobi_block.1} parent=1 // pred_region
      _
    $region21: #{fractional_jacobi_block.1} parent=1 // pred_fallthru
      _
    %85 = vsyncpa [#allocation3], 1

</llo_original>
